<compile_context>
chip_gen: v7x
topology: tpu7x:2x2x1
jax: 0.10.0
libtpu: 0.0.40
codegen_flags: <defaults>
</compile_context>

<pallas_src>
import math

import jax
import jax.numpy as jnp
from jax.experimental import pallas as pl
from jax.experimental.pallas import tpu as pltpu

_LANES = 128
_SUBLANES = 8
_NCORES = 2                       # leading 'parallel' axis: 2 TCs on v7x,
                                  # runs sequentially (harmless) on v5e/v6e
_MAX_TILE_ROWS = 8192             # (8192, 128) f32 = 4 MiB streamed per step
_VMEM_LIMIT = 32 * 1024 * 1024    # headroom; valid on v5e/v6e/v7x


def _acc_rows_for(tile_rows):
    """Largest accumulator row count in {128,...,8} dividing tile_rows."""
    for d in (128, 64, 32, 16, 8):
        if tile_rows % d == 0:
            return d
    return 8


def _make_sum_kernel(tile_rows, acc_rows, rows_per_core, steps, needs_mask):
    """Streaming sum over one (tile_rows, 128) f32 tile per grid step."""
    chunks = tile_rows // acc_rows

    def reduce_tile(x):
        # (tile_rows,128) -> (chunks, acc_rows, 128); summing the leading axis
        # is pure element-wise VPU adds in `chunks`-deep chains spread over
        # acc_rows/8 independent output vregs (no XLU work).
        return x.reshape(chunks, acc_rows, _LANES).sum(axis=0)

    def kernel(x_ref, acc_ref):
        i = pl.program_id(1)

        @pl.when(i == 0)
        def _init():
            acc_ref[...] = jnp.zeros_like(acc_ref)

        x = x_ref[...]

        if needs_mask:
            is_last = i == steps - 1

            @pl.when(jnp.logical_not(is_last))
            def _full_tile():
                acc_ref[...] += reduce_tile(x)

            @pl.when(is_last)
            def _tail_tile():
                # Rows past rows_per_core hold unspecified data -> zero them.
                row = (jax.lax.broadcasted_iota(
                    jnp.int32, (tile_rows, _LANES), 0) + i * tile_rows)
                acc_ref[...] += reduce_tile(
                    jnp.where(row < rows_per_core, x, 0.0))
        else:
            acc_ref[...] += reduce_tile(x)

    return kernel


@jax.jit
def complex_mse(y_true, y_pred):
    """mean(|y_true - y_pred|^2) for complex inputs of identical shape."""
    assert y_true.shape == y_pred.shape
    n_elems = math.prod(y_true.shape) if y_true.shape else 1

    # Single fused elementwise XLA pass (single root => one loop fusion):
    # reads both complex inputs once, writes only 4 B/elem of |diff|^2.
    dr = (jnp.real(y_true) - jnp.real(y_pred)).astype(jnp.float32)
    di = (jnp.imag(y_true) - jnp.imag(y_pred)).astype(jnp.float32)
    sq = dr * dr + di * di

    flat = sq.reshape(-1)
    pad = (-flat.shape[0]) % (_NCORES * _SUBLANES * _LANES)
    if pad:  # no-op for typical NCHW sizes; padded zeros add 0 to the sum
        flat = jnp.pad(flat, (0, pad))

    rows_per_core = flat.shape[0] // (_NCORES * _LANES)   # multiple of 8
    slab = flat.reshape(_NCORES, rows_per_core, _LANES)   # free bitcast

    tile_rows = min(_MAX_TILE_ROWS, rows_per_core)        # multiple of 8
    acc_rows = _acc_rows_for(tile_rows)
    steps = pl.cdiv(rows_per_core, tile_rows)
    needs_mask = (rows_per_core % tile_rows) != 0

    partials = pl.pallas_call(
        _make_sum_kernel(tile_rows, acc_rows, rows_per_core, steps, needs_mask),
        out_shape=jax.ShapeDtypeStruct((_NCORES, acc_rows, _LANES), jnp.float32),
        grid=(_NCORES, steps),
        in_specs=[pl.BlockSpec((None, tile_rows, _LANES),
                               lambda c, i: (c, i, 0))],
        out_specs=pl.BlockSpec((None, acc_rows, _LANES),
                               lambda c, i: (c, 0, 0)),
        compiler_params=pltpu.CompilerParams(
            dimension_semantics=("parallel", "arbitrary"),
            vmem_limit_bytes=_VMEM_LIMIT),
    )(slab)

    # Single final cross-lane reduction + divide by the true complex count.
    return jnp.sum(partials) / jnp.float32(n_elems)


if __name__ == "__main__":
    key = jax.random.PRNGKey(0)
    k1, k2, k3, k4, k5, k6, k7, k8 = jax.random.split(key, 8)

    # Small NCHW-shaped complex tensors (divisible case).
    B, C, H, W = 2, 4, 16, 16
    y_true = (jax.random.normal(k1, (B, C, H, W), jnp.float32)
              + 1j * jax.random.normal(k2, (B, C, H, W), jnp.float32)
              ).astype(jnp.complex64)
    y_pred = (jax.random.normal(k3, (B, C, H, W), jnp.float32)
              + 1j * jax.random.normal(k4, (B, C, H, W), jnp.float32)
              ).astype(jnp.complex64)

    out = jax.block_until_ready(complex_mse(y_true, y_pred))
    ref = jnp.mean(jnp.square(jnp.abs(y_true - y_pred)))
    assert jnp.allclose(out, ref, rtol=1e-5, atol=1e-5), (out, ref)

    # Awkward (non 8*128-divisible) shape exercises the padding path.
    a = (jax.random.normal(k5, (3, 5, 7), jnp.float32)
         + 1j * jax.random.normal(k6, (3, 5, 7), jnp.float32)).astype(jnp.complex64)
    b = (jax.random.normal(k7, (3, 5, 7), jnp.float32)
         + 1j * jax.random.normal(k8, (3, 5, 7), jnp.float32)).astype(jnp.complex64)
    out2 = jax.block_until_ready(complex_mse(a, b))
    ref2 = jnp.mean(jnp.square(jnp.abs(a - b)))
    assert jnp.allclose(out2, ref2, rtol=1e-5, atol=1e-5), (out2, ref2)

    print("KERNEL_OK")
</pallas_src>

<mosaic_0001>
module attributes {stable_mosaic.version = 11 : i64} {
  func.func @kernel(%arg0: i32, %arg1: i32, %arg2: memref<1x8x128xf32, #tpu.memory_space<vmem>>, %arg3: memref<1x8x128xf32, #tpu.memory_space<vmem>>) attributes {dimension_semantics = [#tpu.dimension_semantics<parallel>, #tpu.dimension_semantics<arbitrary>], iteration_bounds = array<i64: 2, 1>, scalar_prefetch = 0 : i64, scratch_operands = 0 : i64, tpu.core_type = #tpu.core_type<tc>, window_params = [{transform_indices = @transform_0, window_bounds = array<i64: 1, 8, 128>}, {transform_indices = @transform_1, window_bounds = array<i64: 1, 8, 128>}]} {
    %c0_i32 = arith.constant 0 : i32
    %0 = arith.cmpi eq, %arg1, %c0_i32 : i32
    %1 = arith.extui %0 : i1 to i32
    %c0_i32_0 = arith.constant 0 : i32
    %2 = arith.cmpi ne, %1, %c0_i32_0 : i32
    scf.if %2 {
      %cst_9 = arith.constant 0.000000e+00 : f32
      %13 = vector.broadcast %cst_9 : f32 to vector<8x128xf32>
      %c0_10 = arith.constant 0 : index
      %c0_11 = arith.constant 0 : index
      %c0_12 = arith.constant 0 : index
      %14 = vector.load %arg3[%c0_10, %c0_11, %c0_12] : memref<1x8x128xf32, #tpu.memory_space<vmem>>, vector<1x8x128xf32>
      %15 = vector.shape_cast %14 : vector<1x8x128xf32> to vector<8x128xf32>
      %16 = vector.shape_cast %13 : vector<8x128xf32> to vector<1x8x128xf32>
      tpu.vector_store %arg3[%c0_10, %c0_11, %c0_12], %16 {strides = array<i32>} : memref<1x8x128xf32, #tpu.memory_space<vmem>>, vector<1x8x128xf32>,
    } else {
    }
    %c0 = arith.constant 0 : index
    %c0_1 = arith.constant 0 : index
    %c0_2 = arith.constant 0 : index
    %3 = vector.load %arg2[%c0, %c0_1, %c0_2] : memref<1x8x128xf32, #tpu.memory_space<vmem>>, vector<1x8x128xf32>
    %4 = vector.shape_cast %3 : vector<1x8x128xf32> to vector<8x128xf32>
    %c0_3 = arith.constant 0 : index
    %c0_4 = arith.constant 0 : index
    %c0_5 = arith.constant 0 : index
    %5 = vector.load %arg3[%c0_3, %c0_4, %c0_5] : memref<1x8x128xf32, #tpu.memory_space<vmem>>, vector<1x8x128xf32>
    %6 = vector.shape_cast %5 : vector<1x8x128xf32> to vector<8x128xf32>
    %7 = vector.shape_cast %4 : vector<8x128xf32> to vector<1x8x128xf32>
    %cst = arith.constant dense<0.000000e+00> : vector<8x128xf32>
    %8 = vector.multi_reduction <add>, %7, %cst [0] : vector<1x8x128xf32> to vector<8x128xf32>
    %9 = arith.addf %6, %8 : vector<8x128xf32>
    %c0_6 = arith.constant 0 : index
    %c0_7 = arith.constant 0 : index
    %c0_8 = arith.constant 0 : index
    %10 = vector.load %arg3[%c0_6, %c0_7, %c0_8] : memref<1x8x128xf32, #tpu.memory_space<vmem>>, vector<1x8x128xf32>
    %11 = vector.shape_cast %10 : vector<1x8x128xf32> to vector<8x128xf32>
    %12 = vector.shape_cast %9 : vector<8x128xf32> to vector<1x8x128xf32>
    tpu.vector_store %arg3[%c0_6, %c0_7, %c0_8], %12 {strides = array<i32>} : memref<1x8x128xf32, #tpu.memory_space<vmem>>, vector<1x8x128xf32>,
    return
  }
  func.func @transform_0(%arg0: i32, %arg1: i32) -> (i32, i32, i32) {
    %c0_i32 = arith.constant 0 : i32
    %c0_i32_0 = arith.constant 0 : i32
    return %arg0, %arg1, %c0_i32 : i32, i32, i32
  }
  func.func @transform_1(%arg0: i32, %arg1: i32) -> (i32, i32, i32) {
    %c0_i32 = arith.constant 0 : i32
    %c0_i32_0 = arith.constant 0 : i32
    %c0_i32_1 = arith.constant 0 : i32
    return %arg0, %c0_i32, %c0_i32_0 : i32, i32, i32
  }
}

</mosaic_0001>

<llo_original>
// kernel: custom-call
$region0: #{custom-call}
  %s0 = inlined_call_operand.hbm [shape: c64[2,4,16,16], index: 0, kind: input, shape index: {}]
  %s1 = inlined_call_operand.vmem [shape: f32[2,4,16,16], index: 1, kind: output, shape index: {}]
  $region1: #{custom-call} parent=0
    #allocation0 [shape = 's32[1]{0}', space=sflag, size = 0x4, scoped, tag = 'scoped memory for custom-call']
    %2 = vsyncpa [#allocation0], 0
    %s3 = sshll.u32 %s1, 4
    %s4 = int_to_ptr.vmem [resolvable:$true] %s3
    %6 = dma.hbm_to_vmem [thread:$0]  %s0, 2048, %s4, [#allocation0]
    %7 = dma.done [#allocation0], 2048
    %8 = vsyncpa [#allocation0], 1

// kernel: custom-call.1
$region0: #{custom-call.1}
  %s0 = inlined_call_operand.hbm [shape: c64[2,4,16,16], index: 0, kind: input, shape index: {}]
  %s1 = inlined_call_operand.vmem [shape: f32[2,4,16,16], index: 1, kind: output, shape index: {}]
  %s2 = scalar_lea.hbm %s0, 2048
  $region1: #{custom-call.1} parent=0
    #allocation0 [shape = 's32[1]{0}', space=sflag, size = 0x4, scoped, tag = 'scoped memory for custom-call.1']
    %3 = vsyncpa [#allocation0], 0
    %s4 = sshll.u32 %s1, 4
    %s5 = int_to_ptr.vmem [resolvable:$true] %s4
    %7 = dma.hbm_to_vmem [thread:$0]  %s2, 2048, %s5, [#allocation0]
    %8 = dma.done [#allocation0], 2048
    %9 = vsyncpa [#allocation0], 1

// kernel: complex_mse.1
$region0: #{complex_mse.1}
  #allocation0 [shape = 'u32[]', space=smem, size = 0x4, offset = 0x4, fixed_abs, tag = 'smem constant byte address 0x4 - core index']
  #allocation1 [shape = 'u32[144,128]{1,0:T(1,128)}', space=vmem, size = 0x12000, scoped, tag = 'internal scratch']
  %s0 = inlined_call_operand.vmem [shape: f32[2,8,128], index: 0, kind: input, shape index: {}]
  %s1 = inlined_call_operand.vmem [shape: f32[2,8,128], index: 1, kind: output, shape index: {}]
  %s2 = sld [smem:[#allocation0]]
  $region41: #{complex_mse.1} parent=0
    _
  %s4 = ssub.s32 1, %s2
  %s5 = scalar_select 0, %s4, %s2
  loop: start=0, step=1, limit=4
  $region2: #{complex_mse.1} parent=0 // loop_pre_header
    _
  $region3: #{complex_mse.1} parent=0 // loop_header
    %s7 = sphi 0, %s11
    %p8 = scmp.ge.s32.totalorder %s7, 4
    %s14 = sphi 0, %s26
    %s15 = sphi 0, %s22
    %s16 = sphi 0, %s14
    %s17 = sphi 0, %s15
    %s18 = sphi 0, %s16
    %s19 = sphi 0, %s17
    %s31 = sphi 0, %s33
    %s34 = sphi 0, %s31
    %s35 = sphi 0, %s34
    %s51 = sphi 0, %s35
    %s57 = sphi 0, %s59
    %s60 = sphi 0, %s57
    %s61 = sphi 0, %s60
    %s77 = sphi 0, %s61
  $region4: #{complex_mse.1} parent=0 // loop_header_branch
    %10 = sbr.rel (%p8) target = $region8
  $region5: #{complex_mse.1} parent=0 // loop_body
    %s12 = ssub.s32 %s7, 1
    %s13 = ssub.s32 %s7, 2
    %s20 = sadd.s32 1, %s15
    %p21 = scmp.ge.s32.totalorder %s20, 1
    %s22 = scalar_select %p21, 0, %s20
    %s23 = sadd.s32 1, %s14
    %s24 = scalar_select %p21, %s23, %s14
    %p25 = scmp.ge.s32.totalorder %s24, 2
    %s26 = scalar_select %p25, 0, %s24
    %s27 = ssub.s32 %s14, %s26
    %s28 = ssub.s32 %s15, %s22
    %s29 = sor.u32 %s27, %s28
    %p30 = scmp.eq.s32.totalorder %s29, 0
    %s32 = sadd.s32 %s31, 1
    %s33 = scalar_select %p30, %s31, %s32
    %p36 = pneg %p30
    %p37 = scmp.eq.s32.totalorder %s7, 1
    %p38 = por %p36, %p37
    %p39 = scmp.ne.s32.totalorder %s31, %s34
    %p40 = scmp.eq.s32.totalorder %s7, 0
    %p41 = por %p39, %p40
    %p42 = scmp.ne.s32.totalorder %s31, %s34
    %p43 = scmp.eq.s32.totalorder %s12, 1
    %p44 = por %p42, %p43
    %p45 = scmp.ne.s32.totalorder %s34, %s35
    %p46 = scmp.eq.s32.totalorder %s12, 0
    %p47 = por %p45, %p46
    %p48 = scmp.ne.s32.totalorder %s34, %s35
    %p49 = scmp.eq.s32.totalorder %s13, 1
    %p50 = por %p48, %p49
    %p52 = scmp.ne.s32.totalorder %s35, %s51
    %p53 = scmp.eq.s32.totalorder %s13, 0
    %p54 = por %p52, %p53
    %s55 = ssub.s32 %s14, %s26
    %p56 = scmp.eq.s32.totalorder %s55, 0
    %s58 = sadd.s32 %s57, 1
    %s59 = scalar_select %p56, %s57, %s58
    %p62 = pneg %p56
    %p63 = scmp.eq.s32.totalorder %s7, 1
    %p64 = por %p62, %p63
    %p65 = scmp.ne.s32.totalorder %s57, %s60
    %p66 = scmp.eq.s32.totalorder %s7, 0
    %p67 = por %p65, %p66
    %p68 = scmp.ne.s32.totalorder %s57, %s60
    %p69 = scmp.eq.s32.totalorder %s12, 1
    %p70 = por %p68, %p69
    %p71 = scmp.ne.s32.totalorder %s60, %s61
    %p72 = scmp.eq.s32.totalorder %s12, 0
    %p73 = por %p71, %p72
    %p74 = scmp.ne.s32.totalorder %s60, %s61
    %p75 = scmp.eq.s32.totalorder %s13, 1
    %p76 = por %p74, %p75
    %p78 = scmp.ne.s32.totalorder %s61, %s77
    %p79 = scmp.eq.s32.totalorder %s13, 0
    %p80 = por %p78, %p79
    %p81 = scmp.le.s32.totalorder 1, %s7
    %p82 = scmp.lt.s32.totalorder %s7, 3
    %p83 = pnand %p81, %p82
    %p84 = pneg %p83
    // Predicated region
    $region9: #{complex_mse.1} parent=5 // pred_check
      _
    $region10: #{complex_mse.1} parent=5 // pred_check_branch
      %86 = sbr.rel (%p83) target = $region12
    $region11: #{complex_mse.1} parent=5 // pred_region
      %s87 = ssub.s32 %s7, 1
    $region12: #{complex_mse.1} parent=5 // pred_fallthru
      _
    %p88 = scmp.lt.s32.totalorder %s7, 2
    // Predicated region
    $region13: #{complex_mse.1} parent=5 // pred_check
      %p89 = pneg %p88
    $region14: #{complex_mse.1} parent=5 // pred_check_branch
      %91 = sbr.rel (%p89) target = $region16
    $region15: #{complex_mse.1} parent=5 // pred_region
      // Predicated region
      $region17: #{complex_mse.1} parent=15 // pred_check
        %p92 = pneg %p41
      $region18: #{complex_mse.1} parent=15 // pred_check_branch
        %94 = sbr.rel (%p92) target = $region20
      $region19: #{complex_mse.1} parent=15 // pred_region
        %p95 = scmp.lt.s32.totalorder %s14, 1
        %s96 = scalar_select %p95, %s14, 1
        %p97 = scmp.lt.s32.totalorder %s15, 0
        %s98 = scalar_select %p97, %s15, 0
        %s99 = sadd.s32 %s98, %s96
        %s100 = smul.addr %s99, 8
        %s101 = scalar_lea.vmem %s0, %s100
      $region20: #{complex_mse.1} parent=15 // pred_fallthru
        _
    $region16: #{complex_mse.1} parent=5 // pred_fallthru
      _
    %p102 = scmp.le.s32.totalorder 1, %s7
    %p103 = scmp.lt.s32.totalorder %s7, 3
    %p104 = pnand %p102, %p103
    %p105 = pneg %p104
    // Predicated region
    $region21: #{complex_mse.1} parent=5 // pred_check
      _
    $region22: #{complex_mse.1} parent=5 // pred_check_branch
      %107 = sbr.rel (%p104) target = $region24
    $region23: #{complex_mse.1} parent=5 // pred_region
      %s108 = ssub.s32 %s7, 1
      %p109 = scmp.lt.s32.totalorder %s16, 1
      %s110 = scalar_select %p109, %s16, 1
      %p111 = scmp.lt.s32.totalorder %s17, 0
      %s112 = scalar_select %p111, %s17, 0
      %s113 = sadd.s32 %s112, %s110
      %s114 = smul.addr %s113, 8
      %s115 = scalar_lea.vmem %s0, %s114
      %p116 = pneg %p47
      %p117 = pneg %p44
      %p118 = pneg %p73
      %p119 = pneg %p70
      %p120 = scmp.lt.s32.totalorder %s16, 1
      %s121 = scalar_select %p120, %s16, 1
      %s122 = smul.addr %s121, 8
      %s123 = scalar_lea.vmem %s1, %s122
      %p124 = scmp.lt.s32.totalorder %s16, 1
      %s125 = scalar_select %p124, %s16, 1
      %p126 = scmp.lt.s32.totalorder %s17, 0
      %s127 = scalar_select %p126, %s17, 0
      %s128 = sadd.s32 %s127, %s125
      %s129 = smul.addr %s128, 8
      %s130 = scalar_lea.vmem %s0, %s129
      %p131 = scmp.lt.s32.totalorder %s16, 1
      %s132 = scalar_select %p131, %s16, 1
      %s133 = smul.addr %s132, 8
      %s134 = scalar_lea.vmem %s1, %s133
      %p135 = scmp.eq.s32.totalorder %s17, 0
      // Predicated region
      $region25: #{complex_mse.1} parent=23 // pred_check
        %p136 = pneg %p135
      $region26: #{complex_mse.1} parent=23 // pred_check_branch
        %138 = sbr.rel (%p136) target = $region28
      $region27: #{complex_mse.1} parent=23 // pred_region
        %139 = vst [vmem:[%s134] sm:$0xff] 0.0
      $region28: #{complex_mse.1} parent=23 // pred_fallthru
        _
      %v140 = vld [vmem:[%s130] sm:$0xff]
      %v141 = vld [vmem:[%s134] sm:$0xff]
      %v142 = vadd.f32 %v140, 0.0
      %v143 = vadd.f32 %v141, %v142
      %144 = vst [vmem:[%s134] sm:$0xff] %v143
      %p145 = scmp.lt.s32.totalorder %s16, 1
      %s146 = scalar_select %p145, %s16, 1
      %s147 = smul.addr %s146, 8
      %s148 = scalar_lea.vmem %s1, %s147
      // Predicated region
      $region29: #{complex_mse.1} parent=23 // pred_check
        %p149 = pneg %p70
      $region30: #{complex_mse.1} parent=23 // pred_check_branch
        %151 = sbr.rel (%p149) target = $region32
      $region31: #{complex_mse.1} parent=23 // pred_region
        _
      $region32: #{complex_mse.1} parent=23 // pred_fallthru
        _
    $region24: #{complex_mse.1} parent=5 // pred_fallthru
      _
    %p152 = scmp.le.s32.totalorder 2, %s7
    // Predicated region
    $region33: #{complex_mse.1} parent=5 // pred_check
      %p153 = pneg %p152
    $region34: #{complex_mse.1} parent=5 // pred_check_branch
      %155 = sbr.rel (%p153) target = $region36
    $region35: #{complex_mse.1} parent=5 // pred_region
      %s156 = ssub.s32 %s7, 2
      // Predicated region
      $region37: #{complex_mse.1} parent=35 // pred_check
        %p157 = pneg %p76
      $region38: #{complex_mse.1} parent=35 // pred_check_branch
        %159 = sbr.rel (%p157) target = $region40
      $region39: #{complex_mse.1} parent=35 // pred_region
        %p160 = scmp.lt.s32.totalorder %s18, 1
        %s161 = scalar_select %p160, %s18, 1
        %s162 = smul.addr %s161, 8
        %s163 = scalar_lea.vmem %s1, %s162
      $region40: #{complex_mse.1} parent=35 // pred_fallthru
        _
    $region36: #{complex_mse.1} parent=5 // pred_fallthru
      _
  $region6: #{complex_mse.1} parent=0 // loop_footer
    %s11 = sadd.s32 1, %s7
  $region7: #{complex_mse.1} parent=0 // loop_footer_branch
    %6 = sbr.rel target = $region3
  $region8: #{complex_mse.1} parent=0 // loop_exit
    _

</llo_original>
